<compile_context>
chip_gen: v7x
topology: tpu7x:2x2x1
jax: 0.10.0
libtpu: 0.0.40
codegen_flags: <defaults>
</compile_context>

<pallas_src>
import math

import jax
import jax.numpy as jnp
import numpy as np
from jax.experimental import pallas as pl
from jax.experimental.pallas import tpu as pltpu

KH = 30  # conv kernel height: Conv2d(1, 2, (30, 1))

_HAS_STATEFUL_PRNG = hasattr(pltpu, "stateful_normal") and hasattr(pltpu, "prng_seed")


# ---------------------------------------------------------------------------
# Kernel bodies
# ---------------------------------------------------------------------------
def _conv_relu(wband_ref, bias_ref, x_ref):
    # All 3 convolutions x 2 channels in one MXU matmul over the H axis.
    # Default matmul precision matched the 1e-4 reference check on hardware;
    # pin precision=HIGHEST if tolerances ever tighten.
    conv = jnp.dot(wband_ref[...], x_ref[...],
                   preferred_element_type=jnp.float32)
    return jnp.maximum(conv + bias_ref[...], 0.0)


def _epilogue(scal_ref, r, noise_fn, lptc_ref, vm1_ref, vm2_ref):
    # scal_ref : (5, 2) SMEM  -- rows = num1, num2, num3, biasv, finalw.
    # r        : (6*Ho_pad, LB) relu(conv_k(x) + b_k) for all convs/channels.
    # noise_fn : (slot, ch, wo) -> (Ho, wo) float32 standard-normal noise.
    # outputs  : lptc (Ho, LB), vm1/vm2 (2, Ho, LB) packed; columns >= wo are
    #            junk and dropped by the wrapper.
    ho, lb = lptc_ref.shape
    ho_pad = r.shape[0] // 6
    wo = lb - 2  # valid packed output columns

    def g(conv_idx, ch, off):
        # relu(conv_{conv_idx+1}(x shifted by `off` width columns)) on the wo
        # valid columns; sublane start is 8-aligned because Ho_pad % 8 == 0.
        row = (conv_idx * 2 + ch) * ho_pad
        return r[row:row + ho, off:off + wo]

    lptc = None
    for ch in range(2):
        num1 = scal_ref[0, ch]
        num2 = scal_ref[1, ch]
        num3 = scal_ref[2, ch]
        biasv = scal_ref[3, ch]
        finalw = scal_ref[4, ch]

        g1_1 = g(0, ch, 0)   # relu(conv1(s1))
        g2 = g(1, ch, 1)     # relu(conv2(s2))
        g1_3 = g(2, ch, 2)   # relu(conv3(s3))
        g2_1 = g(0, ch, 2)   # relu(conv1(s3))
        g2_3 = g(2, ch, 0)   # relu(conv3(s1))

        t2 = g2 * num2  # shared by comb1 and comb2
        comb1 = g1_1 * num1 + t2 + g1_3 * num3
        comb2 = g2_1 * num1 + t2 + g2_3 * num3
        # approx=False keeps the exact-noise test inside 1e-4; the VPU/EUP have
        # slack (kernel is HBM-bound) so approx reciprocal buys nothing here.
        inv1 = pl.reciprocal(1.0 + g1_1 + g2 + g1_3, approx=False)
        inv2 = pl.reciprocal(1.0 + g2_1 + g2 + g2_3, approx=False)
        vm1 = jnp.maximum(comb1 * inv1 + biasv, 0.0)
        vm2 = jnp.maximum(comb2 * inv2 + biasv, 0.0)
        vm1_ref[ch, :, :wo] = vm1
        vm2_ref[ch, :, :wo] = vm2

        n1 = noise_fn(0, ch, wo)
        n2 = noise_fn(1, ch, wo)
        v = vm1 * (n1 + 1.0) - vm2 * (n2 + 1.0)
        lptc = v * finalw if lptc is None else lptc + v * finalw
    lptc_ref[:, :wo] = lptc


def _synaptic_prng_kernel(scal_ref, seed_ref, wband_ref, bias_ref, x_ref,
                          lptc_ref, vm1_ref, vm2_ref):
    # One deterministic PRNG stream per grid block (independent of which
    # TensorCore executes the block under the "parallel" grid axis).
    pltpu.prng_seed(seed_ref[0] + pl.program_id(0))
    r = _conv_relu(wband_ref, bias_ref, x_ref)
    ho = lptc_ref.shape[0]

    def noise(_slot, _ch, wo):
        return pltpu.stateful_normal((ho, wo), jnp.float32)

    _epilogue(scal_ref, r, noise, lptc_ref, vm1_ref, vm2_ref)


def _synaptic_streamed_kernel(scal_ref, wband_ref, bias_ref, x_ref,
                              n1_ref, n2_ref, lptc_ref, vm1_ref, vm2_ref):
    r = _conv_relu(wband_ref, bias_ref, x_ref)
    nrefs = (n1_ref, n2_ref)

    def noise(slot, ch, wo):
        return nrefs[slot][ch, :, :wo].astype(jnp.float32)

    _epilogue(scal_ref, r, noise, lptc_ref, vm1_ref, vm2_ref)


# ---------------------------------------------------------------------------
# Host-side helpers
# ---------------------------------------------------------------------------
def _round_up(n, m):
    return ((n + m - 1) // m) * m


def _choose_block_batch(n, w, max_lanes, min_blocks=2):
    """Pick (NB, Npad): NB*w % 128 == 0 (or a single full-extent block for tiny
    n), Npad % NB == 0, and Npad // NB >= min_blocks whenever the batch allows
    so both v7x TensorCores get work and input/output DMA pipelines."""
    base = 128 // math.gcd(w, 128)  # smallest NB with NB*w % 128 == 0
    if n < min_blocks * base:
        return n, n                 # single full-extent block (always legal)
    nb_cap = max(((max_lanes // w) // base) * base, base)
    # Cost model: padded batch traffic + ~0.35us fixed per-step overhead
    # expressed in equivalent batch elements.
    step_equiv = 64
    best_key, best_nb, best_pad = None, None, None
    for cand in range(base, nb_cap + 1, base):
        n_pad = _round_up(n, cand)
        n_blocks = n_pad // cand
        if n_blocks < min_blocks:
            continue
        key = (n_pad + step_equiv * n_blocks, n_pad, -cand)
        if best_key is None or key < best_key:
            best_key, best_nb, best_pad = key, cand, n_pad
    if best_nb is None:             # cannot keep min_blocks: single padded pass
        nb = min(nb_cap, _round_up(n, base))
        return nb, _round_up(n, nb)
    return best_nb, best_pad


def _banded_conv_weights(params, H, Ho, Ho_pad):
    # (6*Ho_pad, H): row (conv*2 + ch)*Ho_pad + r holds the conv's taps for
    # output row r at columns r..r+KH-1; padding rows (r >= Ho) are zero.
    rows = jnp.arange(Ho_pad)[:, None]
    cols = jnp.arange(H)[None, :]
    tap = cols - rows
    valid = (tap >= 0) & (tap < KH) & (rows < Ho)
    tap_c = jnp.clip(tap, 0, KH - 1)

    def band(w):  # (2, KH) -> (2*Ho_pad, H)
        return jnp.where(valid[None], w[:, tap_c], 0.0).reshape(2 * Ho_pad, H)

    return jnp.concatenate(
        [band(params["w1"]), band(params["w2"]), band(params["w3"])],
        axis=0).astype(jnp.float32)


def _conv_bias_column(params, Ho, Ho_pad):
    mask = (jnp.arange(Ho_pad) < Ho).astype(jnp.float32)

    def col(b):  # (2,) -> (2*Ho_pad, 1)
        return (b[:, None] * mask[None, :]).reshape(2 * Ho_pad, 1)

    return jnp.concatenate(
        [col(params["b1"]), col(params["b2"]), col(params["b3"])],
        axis=0).astype(jnp.float32)


def _pack_noise(nz, n_pad, w):
    # (N, 2, Ho, Wc) -> packed (2, Ho, Npad*W); zeros in junk/padding columns.
    n, two, ho, wc = nz.shape
    nzp = jnp.pad(nz, ((0, n_pad - n), (0, 0), (0, 0), (0, w - wc)))
    return jnp.transpose(nzp, (1, 2, 0, 3)).reshape(
        two, ho, n_pad * w).astype(jnp.float32)


def synaptic_forward(x, params, *, noise1=None, noise2=None, seed=0,
                     max_lanes=8192):
    """x: (N, 1, H, W) float32.  Optional noise1/noise2: (N, 2, Ho, Wc) for an
    exact, deterministic run (otherwise noise is generated in-kernel).

    Returns (LPTC (N, Ho, Wc), Vm_1 (N, 2, Ho, Wc), Vm_2 (N, 2, Ho, Wc))."""
    assert (noise1 is None) == (noise2 is None)
    N, C, H, W = x.shape
    assert C == 1, "Synaptic_Model expects a single input channel"
    Ho, Wc = H - KH + 1, W - 2
    Ho_pad = _round_up(Ho, 8)

    NB, Npad = _choose_block_batch(N, W, max_lanes)
    LB = NB * W
    grid = (Npad // NB,)

    scal = jnp.stack([params["num1"], params["num2"], params["num3"],
                      params["biasv"], params["finalw"]]).astype(jnp.float32)
    wband = _banded_conv_weights(params, H, Ho, Ho_pad)
    bias_col = _conv_bias_column(params, Ho, Ho_pad)

    xN = x[:, 0]
    if Npad != N:
        xN = jnp.pad(xN, ((0, Npad - N), (0, 0), (0, 0)))
    # Lane-dense packing: (Npad, H, W) -> (H, Npad*W).
    xp = jnp.transpose(xN, (1, 0, 2)).reshape(H, Npad * W)

    smem = pl.BlockSpec(memory_space=pltpu.MemorySpace.SMEM)
    wband_spec = pl.BlockSpec((6 * Ho_pad, H), lambda b: (0, 0))
    bias_spec = pl.BlockSpec((6 * Ho_pad, 1), lambda b: (0, 0))
    x_spec = pl.BlockSpec((H, LB), lambda b: (0, b))
    noise_spec = pl.BlockSpec((2, Ho, LB), lambda b: (0, 0, b))
    out_specs = (
        pl.BlockSpec((Ho, LB), lambda b: (0, b)),
        pl.BlockSpec((2, Ho, LB), lambda b: (0, 0, b)),
        pl.BlockSpec((2, Ho, LB), lambda b: (0, 0, b)),
    )
    out_shapes = (
        jax.ShapeDtypeStruct((Ho, Npad * W), jnp.float32),
        jax.ShapeDtypeStruct((2, Ho, Npad * W), jnp.float32),
        jax.ShapeDtypeStruct((2, Ho, Npad * W), jnp.float32),
    )
    cparams = pltpu.CompilerParams(
        dimension_semantics=("parallel",),
        vmem_limit_bytes=48 * 1024 * 1024)

    outs = None
    if noise1 is None and _HAS_STATEFUL_PRNG:
        # Fast path: Gaussian noise generated in-kernel.
        try:
            outs = pl.pallas_call(
                _synaptic_prng_kernel,
                out_shape=out_shapes, grid=grid,
                in_specs=[smem, smem, wband_spec, bias_spec, x_spec],
                out_specs=out_specs, compiler_params=cparams,
            )(scal, jnp.asarray([seed], jnp.int32), wband, bias_col, xp)
        except Exception:
            outs = None  # older Mosaic/jax: fall back to streamed noise below

    if outs is None:
        if noise1 is not None:
            n1p = _pack_noise(noise1, Npad, W)
            n2p = _pack_noise(noise2, Npad, W)
        else:
            # Fallback: bf16 halves the noise HBM stream and it is generated
            # directly in the packed layout (no repack pass).
            k1, k2 = jax.random.split(jax.random.PRNGKey(seed))
            n1p = jax.random.normal(k1, (2, Ho, Npad * W), jnp.bfloat16)
            n2p = jax.random.normal(k2, (2, Ho, Npad * W), jnp.bfloat16)
        outs = pl.pallas_call(
            _synaptic_streamed_kernel,
            out_shape=out_shapes, grid=grid,
            in_specs=[smem, wband_spec, bias_spec, x_spec, noise_spec,
                      noise_spec],
            out_specs=out_specs, compiler_params=cparams,
        )(scal, wband, bias_col, xp, n1p, n2p)

    lptc_p, vm1_p, vm2_p = outs
    # Unpack: drop junk/padded columns, restore (N, ...) order.
    lptc = jnp.transpose(lptc_p.reshape(Ho, Npad, W)[:, :N, :Wc], (1, 0, 2))
    vm1 = jnp.transpose(vm1_p.reshape(2, Ho, Npad, W)[:, :, :N, :Wc],
                        (2, 0, 1, 3))
    vm2 = jnp.transpose(vm2_p.reshape(2, Ho, Npad, W)[:, :, :N, :Wc],
                        (2, 0, 1, 3))
    return lptc, vm1, vm2


# ---------------------------------------------------------------------------
# Pure-JAX reference and tests
# ---------------------------------------------------------------------------
def ref_forward(x, params, noise1, noise2):
    """Pure-JAX reference matching the PyTorch forward (noise passed in)."""
    def conv_relu(s, w2d, b):
        w = w2d[:, None, :, None]  # (2, 1, 30, 1) OIHW
        y = jax.lax.conv_general_dilated(
            s, w, window_strides=(1, 1), padding="VALID",
            dimension_numbers=("NCHW", "OIHW", "NCHW"),
            precision=jax.lax.Precision.HIGHEST)
        return jax.nn.relu(y + b[None, :, None, None])

    s1 = x[:, :, :, :-2]
    s2 = x[:, :, :, 1:-1]
    s3 = x[:, :, :, 2:]
    g1_1 = conv_relu(s1, params["w1"], params["b1"])
    g2 = conv_relu(s2, params["w2"], params["b2"])
    g1_3 = conv_relu(s3, params["w3"], params["b3"])
    g2_1 = conv_relu(s3, params["w1"], params["b1"])
    g2_3 = conv_relu(s1, params["w3"], params["b3"])

    num1 = params["num1"][None, :, None, None]
    num2 = params["num2"][None, :, None, None]
    num3 = params["num3"][None, :, None, None]
    biasv = params["biasv"][None, :, None, None]

    c1 = g1_1 * num1 + g2 * num2 + g1_3 * num3
    c2 = g2_1 * num1 + g2 * num2 + g2_3 * num3
    vm1 = jax.nn.relu(c1 / (1.0 + g1_1 + g2 + g1_3) + biasv)
    vm2 = jax.nn.relu(c2 / (1.0 + g2_1 + g2 + g2_3) + biasv)
    V = vm1 * (noise1 + 1.0) - vm2 * (noise2 + 1.0)
    lptc = V[:, 0] * params["finalw"][0] + V[:, 1] * params["finalw"][1]
    return lptc, vm1, vm2


def _make_inputs(key, N, H, W, with_noise):
    Ho, Wc = H - KH + 1, W - 2
    ks = jax.random.split(key, 16)
    bound = 1.0 / np.sqrt(KH)  # Conv2d default init scale (fan_in = 1*30*1)
    params = {
        "w1": jax.random.uniform(ks[0], (2, KH), jnp.float32, -bound, bound),
        "b1": jax.random.uniform(ks[1], (2,), jnp.float32, -bound, bound),
        "w2": jax.random.uniform(ks[2], (2, KH), jnp.float32, -bound, bound),
        "b2": jax.random.uniform(ks[3], (2,), jnp.float32, -bound, bound),
        "w3": jax.random.uniform(ks[4], (2, KH), jnp.float32, -bound, bound),
        "b3": jax.random.uniform(ks[5], (2,), jnp.float32, -bound, bound),
        # nn.Parameter(torch.rand(2, 1, 1)) -> stored flat as (2,)
        "num1": jax.random.uniform(ks[6], (2,), jnp.float32),
        "num2": jax.random.uniform(ks[7], (2,), jnp.float32),
        "num3": jax.random.uniform(ks[8], (2,), jnp.float32),
        "biasv": jax.random.uniform(ks[9], (2,), jnp.float32),
        "finalw": jax.random.uniform(ks[10], (2,), jnp.float32),
    }
    x = jax.random.normal(ks[11], (N, 1, H, W), jnp.float32)
    noise1 = noise2 = None
    if with_noise:
        noise1 = jax.random.normal(ks[12], (N, 2, Ho, Wc), jnp.float32)
        noise2 = jax.random.normal(ks[13], (N, 2, Ho, Wc), jnp.float32)
    return params, x, noise1, noise2


def _check_exact(N, H, W, key):
    # Deterministic externally supplied noise -> exact match with the reference.
    params, x, noise1, noise2 = _make_inputs(key, N, H, W, with_noise=True)
    outs = synaptic_forward(x, params, noise1=noise1, noise2=noise2)
    jax.block_until_ready(outs)
    refs = ref_forward(x, params, noise1, noise2)
    for got, want in zip(outs, refs):
        np.testing.assert_allclose(np.asarray(got), np.asarray(want),
                                   rtol=1e-4, atol=1e-4)


def _check_default(N, H, W, key, seed):
    # Default fast path (in-kernel PRNG noise when available).  Vm_1/Vm_2 are
    # noise-independent -> checked exactly; LPTC checked for shape/finiteness.
    params, x, _, _ = _make_inputs(key, N, H, W, with_noise=False)
    lptc, vm1, vm2 = synaptic_forward(x, params, seed=seed)
    jax.block_until_ready((lptc, vm1, vm2))
    Ho, Wc = H - KH + 1, W - 2
    zeros = jnp.zeros((N, 2, Ho, Wc), jnp.float32)
    _, vm1_ref, vm2_ref = ref_forward(x, params, zeros, zeros)
    np.testing.assert_allclose(np.asarray(vm1), np.asarray(vm1_ref),
                               rtol=1e-4, atol=1e-4)
    np.testing.assert_allclose(np.asarray(vm2), np.asarray(vm2_ref),
                               rtol=1e-4, atol=1e-4)
    assert lptc.shape == (N, Ho, Wc)
    assert bool(jnp.all(jnp.isfinite(lptc)))


if __name__ == "__main__":
    # Exact numerical checks: tiny single-block case and a multi-block batch.
    _check_exact(N=2, H=40, W=18, key=jax.random.PRNGKey(0))
    _check_exact(N=128, H=40, W=18, key=jax.random.PRNGKey(1))
    # Default fast path with in-kernel PRNG noise (grid of 2 parallel blocks).
    _check_default(N=128, H=40, W=18, key=jax.random.PRNGKey(2), seed=7)
    # Batch not divisible by the 64-element lane-alignment base: exercises the
    # hardened block chooser (batch padding + multi-block grid).
    _check_default(N=130, H=40, W=18, key=jax.random.PRNGKey(3), seed=11)
    print("KERNEL_OK")
</pallas_src>

<mosaic_0001>
module attributes {stable_mosaic.version = 11 : i64} {
  func.func @_synaptic_streamed_kernel(%arg0: i32, %arg1: memref<5x2xf32, #tpu.memory_space<smem>>, %arg2: memref<96x40xf32, #tpu.memory_space<vmem>>, %arg3: memref<96x1xf32, #tpu.memory_space<vmem>>, %arg4: memref<40x36xf32, #tpu.memory_space<vmem>>, %arg5: memref<2x11x36xf32, #tpu.memory_space<vmem>>, %arg6: memref<2x11x36xf32, #tpu.memory_space<vmem>>, %arg7: memref<11x36xf32, #tpu.memory_space<vmem>>, %arg8: memref<2x11x36xf32, #tpu.memory_space<vmem>>, %arg9: memref<2x11x36xf32, #tpu.memory_space<vmem>>) attributes {dimension_semantics = [#tpu.dimension_semantics<parallel>], iteration_bounds = array<i64: 1>, scalar_prefetch = 0 : i64, scratch_operands = 0 : i64, tpu.core_type = #tpu.core_type<tc>, window_params = [{transform_indices = @transform_0, window_bounds = array<i64: 5, 2>}, {pipeline_mode = #tpu.pipeline_mode<synchronous>, transform_indices = @transform_1, window_bounds = array<i64: 96, 40>}, {pipeline_mode = #tpu.pipeline_mode<synchronous>, transform_indices = @transform_2, window_bounds = array<i64: 96, 1>}, {transform_indices = @transform_3, window_bounds = array<i64: 40, 36>}, {transform_indices = @transform_4, window_bounds = array<i64: 2, 11, 36>}, {transform_indices = @transform_5, window_bounds = array<i64: 2, 11, 36>}, {transform_indices = @transform_6, window_bounds = array<i64: 11, 36>}, {transform_indices = @transform_7, window_bounds = array<i64: 2, 11, 36>}, {transform_indices = @transform_8, window_bounds = array<i64: 2, 11, 36>}]} {
    %c0 = arith.constant 0 : index
    %c0_0 = arith.constant 0 : index
    %0 = vector.load %arg2[%c0, %c0_0] : memref<96x40xf32, #tpu.memory_space<vmem>>, vector<96x40xf32>
    %c0_1 = arith.constant 0 : index
    %c0_2 = arith.constant 0 : index
    %1 = vector.load %arg4[%c0_1, %c0_2] : memref<40x36xf32, #tpu.memory_space<vmem>>, vector<40x36xf32>
    %cst = arith.constant dense<0.000000e+00> : vector<96x36xf32>
    %2 = tpu.matmul %0, %1, %cst {dimension_numbers = #tpu.dot_dimension_numbers<[1], [0], [0], [1], [0, 0, 1, 1], [], []>} : vector<96x40xf32>, vector<40x36xf32>, vector<96x36xf32> -> vector<96x36xf32>
    %c0_3 = arith.constant 0 : index
    %c0_4 = arith.constant 0 : index
    %3 = vector.load %arg3[%c0_3, %c0_4] : memref<96x1xf32, #tpu.memory_space<vmem>>, vector<96x1xf32>
    %4 = vector.broadcast %3 : vector<96x1xf32> to vector<96x36xf32>
    %5 = arith.addf %2, %4 : vector<96x36xf32>
    %cst_5 = arith.constant 0.000000e+00 : f32
    %6 = vector.broadcast %cst_5 : f32 to vector<96x36xf32>
    %7 = arith.maximumf %5, %6 : vector<96x36xf32>
    %c0_6 = arith.constant 0 : index
    %c0_7 = arith.constant 0 : index
    %8 = memref.load %arg1[%c0_6, %c0_7] : memref<5x2xf32, #tpu.memory_space<smem>>
    %c1 = arith.constant 1 : index
    %c0_8 = arith.constant 0 : index
    %9 = memref.load %arg1[%c1, %c0_8] : memref<5x2xf32, #tpu.memory_space<smem>>
    %c2 = arith.constant 2 : index
    %c0_9 = arith.constant 0 : index
    %10 = memref.load %arg1[%c2, %c0_9] : memref<5x2xf32, #tpu.memory_space<smem>>
    %c3 = arith.constant 3 : index
    %c0_10 = arith.constant 0 : index
    %11 = memref.load %arg1[%c3, %c0_10] : memref<5x2xf32, #tpu.memory_space<smem>>
    %c4 = arith.constant 4 : index
    %c0_11 = arith.constant 0 : index
    %12 = memref.load %arg1[%c4, %c0_11] : memref<5x2xf32, #tpu.memory_space<smem>>
    %13 = vector.extract_strided_slice %7 {offsets = [0, 0], sizes = [11, 34], strides = [1, 1]} : vector<96x36xf32> to vector<11x34xf32>
    %14 = vector.extract_strided_slice %7 {offsets = [32, 1], sizes = [11, 34], strides = [1, 1]} : vector<96x36xf32> to vector<11x34xf32>
    %15 = vector.extract_strided_slice %7 {offsets = [64, 2], sizes = [11, 34], strides = [1, 1]} : vector<96x36xf32> to vector<11x34xf32>
    %16 = vector.extract_strided_slice %7 {offsets = [0, 2], sizes = [11, 34], strides = [1, 1]} : vector<96x36xf32> to vector<11x34xf32>
    %17 = vector.extract_strided_slice %7 {offsets = [64, 0], sizes = [11, 34], strides = [1, 1]} : vector<96x36xf32> to vector<11x34xf32>
    %18 = vector.broadcast %9 : f32 to vector<11x34xf32>
    %19 = arith.mulf %14, %18 : vector<11x34xf32>
    %20 = vector.broadcast %8 : f32 to vector<11x34xf32>
    %21 = arith.mulf %13, %20 : vector<11x34xf32>
    %22 = arith.addf %21, %19 : vector<11x34xf32>
    %23 = vector.broadcast %10 : f32 to vector<11x34xf32>
    %24 = arith.mulf %15, %23 : vector<11x34xf32>
    %25 = arith.addf %22, %24 : vector<11x34xf32>
    %26 = vector.broadcast %8 : f32 to vector<11x34xf32>
    %27 = arith.mulf %16, %26 : vector<11x34xf32>
    %28 = arith.addf %27, %19 : vector<11x34xf32>
    %29 = vector.broadcast %10 : f32 to vector<11x34xf32>
    %30 = arith.mulf %17, %29 : vector<11x34xf32>
    %31 = arith.addf %28, %30 : vector<11x34xf32>
    %cst_12 = arith.constant 1.000000e+00 : f32
    %32 = vector.broadcast %cst_12 : f32 to vector<11x34xf32>
    %33 = arith.addf %32, %13 : vector<11x34xf32>
    %34 = arith.addf %33, %14 : vector<11x34xf32>
    %35 = arith.addf %34, %15 : vector<11x34xf32>
    %36 = tpu.reciprocal %35 : vector<11x34xf32> -> vector<11x34xf32>
    %cst_13 = arith.constant 1.000000e+00 : f32
    %37 = vector.broadcast %cst_13 : f32 to vector<11x34xf32>
    %38 = arith.addf %37, %16 : vector<11x34xf32>
    %39 = arith.addf %38, %14 : vector<11x34xf32>
    %40 = arith.addf %39, %17 : vector<11x34xf32>
    %41 = tpu.reciprocal %40 : vector<11x34xf32> -> vector<11x34xf32>
    %42 = arith.mulf %25, %36 : vector<11x34xf32>
    %43 = vector.broadcast %11 : f32 to vector<11x34xf32>
    %44 = arith.addf %42, %43 : vector<11x34xf32>
    %cst_14 = arith.constant 0.000000e+00 : f32
    %45 = vector.broadcast %cst_14 : f32 to vector<11x34xf32>
    %46 = arith.maximumf %44, %45 : vector<11x34xf32>
    %47 = arith.mulf %31, %41 : vector<11x34xf32>
    %48 = vector.broadcast %11 : f32 to vector<11x34xf32>
    %49 = arith.addf %47, %48 : vector<11x34xf32>
    %cst_15 = arith.constant 0.000000e+00 : f32
    %50 = vector.broadcast %cst_15 : f32 to vector<11x34xf32>
    %51 = arith.maximumf %49, %50 : vector<11x34xf32>
    %c0_16 = arith.constant 0 : index
    %c0_17 = arith.constant 0 : index
    %c0_18 = arith.constant 0 : index
    %52 = vector.load %arg8[%c0_16, %c0_17, %c0_18] : memref<2x11x36xf32, #tpu.memory_space<vmem>>, vector<1x11x34xf32>
    %53 = vector.shape_cast %52 : vector<1x11x34xf32> to vector<11x34xf32>
    %54 = vector.shape_cast %46 : vector<11x34xf32> to vector<1x11x34xf32>
    tpu.vector_store %arg8[%c0_16, %c0_17, %c0_18], %54 {strides = array<i32>} : memref<2x11x36xf32, #tpu.memory_space<vmem>>, vector<1x11x34xf32>,
    %c0_19 = arith.constant 0 : index
    %c0_20 = arith.constant 0 : index
    %c0_21 = arith.constant 0 : index
    %55 = vector.load %arg9[%c0_19, %c0_20, %c0_21] : memref<2x11x36xf32, #tpu.memory_space<vmem>>, vector<1x11x34xf32>
    %56 = vector.shape_cast %55 : vector<1x11x34xf32> to vector<11x34xf32>
    %57 = vector.shape_cast %51 : vector<11x34xf32> to vector<1x11x34xf32>
    tpu.vector_store %arg9[%c0_19, %c0_20, %c0_21], %57 {strides = array<i32>} : memref<2x11x36xf32, #tpu.memory_space<vmem>>, vector<1x11x34xf32>,
    %c0_22 = arith.constant 0 : index
    %c0_23 = arith.constant 0 : index
    %c0_24 = arith.constant 0 : index
    %58 = vector.load %arg5[%c0_22, %c0_23, %c0_24] : memref<2x11x36xf32, #tpu.memory_space<vmem>>, vector<1x11x34xf32>
    %59 = vector.shape_cast %58 : vector<1x11x34xf32> to vector<11x34xf32>
    %c0_25 = arith.constant 0 : index
    %c0_26 = arith.constant 0 : index
    %c0_27 = arith.constant 0 : index
    %60 = vector.load %arg6[%c0_25, %c0_26, %c0_27] : memref<2x11x36xf32, #tpu.memory_space<vmem>>, vector<1x11x34xf32>
    %61 = vector.shape_cast %60 : vector<1x11x34xf32> to vector<11x34xf32>
    %cst_28 = arith.constant 1.000000e+00 : f32
    %62 = vector.broadcast %cst_28 : f32 to vector<11x34xf32>
    %63 = arith.addf %59, %62 : vector<11x34xf32>
    %64 = arith.mulf %46, %63 : vector<11x34xf32>
    %cst_29 = arith.constant 1.000000e+00 : f32
    %65 = vector.broadcast %cst_29 : f32 to vector<11x34xf32>
    %66 = arith.addf %61, %65 : vector<11x34xf32>
    %67 = arith.mulf %51, %66 : vector<11x34xf32>
    %68 = arith.subf %64, %67 : vector<11x34xf32>
    %69 = vector.broadcast %12 : f32 to vector<11x34xf32>
    %70 = arith.mulf %68, %69 : vector<11x34xf32>
    %c0_30 = arith.constant 0 : index
    %c1_31 = arith.constant 1 : index
    %71 = memref.load %arg1[%c0_30, %c1_31] : memref<5x2xf32, #tpu.memory_space<smem>>
    %c1_32 = arith.constant 1 : index
    %c1_33 = arith.constant 1 : index
    %72 = memref.load %arg1[%c1_32, %c1_33] : memref<5x2xf32, #tpu.memory_space<smem>>
    %c2_34 = arith.constant 2 : index
    %c1_35 = arith.constant 1 : index
    %73 = memref.load %arg1[%c2_34, %c1_35] : memref<5x2xf32, #tpu.memory_space<smem>>
    %c3_36 = arith.constant 3 : index
    %c1_37 = arith.constant 1 : index
    %74 = memref.load %arg1[%c3_36, %c1_37] : memref<5x2xf32, #tpu.memory_space<smem>>
    %c4_38 = arith.constant 4 : index
    %c1_39 = arith.constant 1 : index
    %75 = memref.load %arg1[%c4_38, %c1_39] : memref<5x2xf32, #tpu.memory_space<smem>>
    %76 = vector.extract_strided_slice %7 {offsets = [16, 0], sizes = [11, 34], strides = [1, 1]} : vector<96x36xf32> to vector<11x34xf32>
    %77 = vector.extract_strided_slice %7 {offsets = [48, 1], sizes = [11, 34], strides = [1, 1]} : vector<96x36xf32> to vector<11x34xf32>
    %78 = vector.extract_strided_slice %7 {offsets = [80, 2], sizes = [11, 34], strides = [1, 1]} : vector<96x36xf32> to vector<11x34xf32>
    %79 = vector.extract_strided_slice %7 {offsets = [16, 2], sizes = [11, 34], strides = [1, 1]} : vector<96x36xf32> to vector<11x34xf32>
    %80 = vector.extract_strided_slice %7 {offsets = [80, 0], sizes = [11, 34], strides = [1, 1]} : vector<96x36xf32> to vector<11x34xf32>
    %81 = vector.broadcast %72 : f32 to vector<11x34xf32>
    %82 = arith.mulf %77, %81 : vector<11x34xf32>
    %83 = vector.broadcast %71 : f32 to vector<11x34xf32>
    %84 = arith.mulf %76, %83 : vector<11x34xf32>
    %85 = arith.addf %84, %82 : vector<11x34xf32>
    %86 = vector.broadcast %73 : f32 to vector<11x34xf32>
    %87 = arith.mulf %78, %86 : vector<11x34xf32>
    %88 = arith.addf %85, %87 : vector<11x34xf32>
    %89 = vector.broadcast %71 : f32 to vector<11x34xf32>
    %90 = arith.mulf %79, %89 : vector<11x34xf32>
    %91 = arith.addf %90, %82 : vector<11x34xf32>
    %92 = vector.broadcast %73 : f32 to vector<11x34xf32>
    %93 = arith.mulf %80, %92 : vector<11x34xf32>
    %94 = arith.addf %91, %93 : vector<11x34xf32>
    %cst_40 = arith.constant 1.000000e+00 : f32
    %95 = vector.broadcast %cst_40 : f32 to vector<11x34xf32>
    %96 = arith.addf %95, %76 : vector<11x34xf32>
    %97 = arith.addf %96, %77 : vector<11x34xf32>
    %98 = arith.addf %97, %78 : vector<11x34xf32>
    %99 = tpu.reciprocal %98 : vector<11x34xf32> -> vector<11x34xf32>
    %cst_41 = arith.constant 1.000000e+00 : f32
    %100 = vector.broadcast %cst_41 : f32 to vector<11x34xf32>
    %101 = arith.addf %100, %79 : vector<11x34xf32>
    %102 = arith.addf %101, %77 : vector<11x34xf32>
    %103 = arith.addf %102, %80 : vector<11x34xf32>
    %104 = tpu.reciprocal %103 : vector<11x34xf32> -> vector<11x34xf32>
    %105 = arith.mulf %88, %99 : vector<11x34xf32>
    %106 = vector.broadcast %74 : f32 to vector<11x34xf32>
    %107 = arith.addf %105, %106 : vector<11x34xf32>
    %cst_42 = arith.constant 0.000000e+00 : f32
    %108 = vector.broadcast %cst_42 : f32 to vector<11x34xf32>
    %109 = arith.maximumf %107, %108 : vector<11x34xf32>
    %110 = arith.mulf %94, %104 : vector<11x34xf32>
    %111 = vector.broadcast %74 : f32 to vector<11x34xf32>
    %112 = arith.addf %110, %111 : vector<11x34xf32>
    %cst_43 = arith.constant 0.000000e+00 : f32
    %113 = vector.broadcast %cst_43 : f32 to vector<11x34xf32>
    %114 = arith.maximumf %112, %113 : vector<11x34xf32>
    %c1_44 = arith.constant 1 : index
    %c0_45 = arith.constant 0 : index
    %c0_46 = arith.constant 0 : index
    %115 = vector.load %arg8[%c1_44, %c0_45, %c0_46] : memref<2x11x36xf32, #tpu.memory_space<vmem>>, vector<1x11x34xf32>
    %116 = vector.shape_cast %115 : vector<1x11x34xf32> to vector<11x34xf32>
    %117 = vector.shape_cast %109 : vector<11x34xf32> to vector<1x11x34xf32>
    tpu.vector_store %arg8[%c1_44, %c0_45, %c0_46], %117 {strides = array<i32>} : memref<2x11x36xf32, #tpu.memory_space<vmem>>, vector<1x11x34xf32>,
    %c1_47 = arith.constant 1 : index
    %c0_48 = arith.constant 0 : index
    %c0_49 = arith.constant 0 : index
    %118 = vector.load %arg9[%c1_47, %c0_48, %c0_49] : memref<2x11x36xf32, #tpu.memory_space<vmem>>, vector<1x11x34xf32>
    %119 = vector.shape_cast %118 : vector<1x11x34xf32> to vector<11x34xf32>
    %120 = vector.shape_cast %114 : vector<11x34xf32> to vector<1x11x34xf32>
    tpu.vector_store %arg9[%c1_47, %c0_48, %c0_49], %120 {strides = array<i32>} : memref<2x11x36xf32, #tpu.memory_space<vmem>>, vector<1x11x34xf32>,
    %c1_50 = arith.constant 1 : index
    %c0_51 = arith.constant 0 : index
    %c0_52 = arith.constant 0 : index
    %121 = vector.load %arg5[%c1_50, %c0_51, %c0_52] : memref<2x11x36xf32, #tpu.memory_space<vmem>>, vector<1x11x34xf32>
    %122 = vector.shape_cast %121 : vector<1x11x34xf32> to vector<11x34xf32>
    %c1_53 = arith.constant 1 : index
    %c0_54 = arith.constant 0 : index
    %c0_55 = arith.constant 0 : index
    %123 = vector.load %arg6[%c1_53, %c0_54, %c0_55] : memref<2x11x36xf32, #tpu.memory_space<vmem>>, vector<1x11x34xf32>
    %124 = vector.shape_cast %123 : vector<1x11x34xf32> to vector<11x34xf32>
    %cst_56 = arith.constant 1.000000e+00 : f32
    %125 = vector.broadcast %cst_56 : f32 to vector<11x34xf32>
    %126 = arith.addf %122, %125 : vector<11x34xf32>
    %127 = arith.mulf %109, %126 : vector<11x34xf32>
    %cst_57 = arith.constant 1.000000e+00 : f32
    %128 = vector.broadcast %cst_57 : f32 to vector<11x34xf32>
    %129 = arith.addf %124, %128 : vector<11x34xf32>
    %130 = arith.mulf %114, %129 : vector<11x34xf32>
    %131 = arith.subf %127, %130 : vector<11x34xf32>
    %132 = vector.broadcast %75 : f32 to vector<11x34xf32>
    %133 = arith.mulf %131, %132 : vector<11x34xf32>
    %134 = arith.addf %70, %133 : vector<11x34xf32>
    %c0_58 = arith.constant 0 : index
    %c0_59 = arith.constant 0 : index
    %135 = vector.load %arg7[%c0_58, %c0_59] : memref<11x36xf32, #tpu.memory_space<vmem>>, vector<11x34xf32>
    tpu.vector_store %arg7[%c0_58, %c0_59], %134 {strides = array<i32>} : memref<11x36xf32, #tpu.memory_space<vmem>>, vector<11x34xf32>,
    return
  }
  func.func @transform_0(%arg0: i32) -> (i32, i32) {
    %c0_i32 = arith.constant 0 : i32
    %c0_i32_0 = arith.constant 0 : i32
    %c0_i32_1 = arith.constant 0 : i32
    return %c0_i32, %c0_i32_0 : i32, i32
  }
  func.func @transform_1(%arg0: i32) -> (i32, i32) {
    %c0_i32 = arith.constant 0 : i32
    %c0_i32_0 = arith.constant 0 : i32
    %c0_i32_1 = arith.constant 0 : i32
    return %c0_i32, %c0_i32_0 : i32, i32
  }
  func.func @transform_2(%arg0: i32) -> (i32, i32) {
    %c0_i32 = arith.constant 0 : i32
    %c0_i32_0 = arith.constant 0 : i32
    %c0_i32_1 = arith.constant 0 : i32
    return %c0_i32, %c0_i32_0 : i32, i32
  }
  func.func @transform_3(%arg0: i32) -> (i32, i32) {
    %c0_i32 = arith.constant 0 : i32
    %c0_i32_0 = arith.constant 0 : i32
    return %c0_i32, %arg0 : i32, i32
  }
  func.func @transform_4(%arg0: i32) -> (i32, i32, i32) {
    %c0_i32 = arith.constant 0 : i32
    %c0_i32_0 = arith.constant 0 : i32
    %c0_i32_1 = arith.constant 0 : i32
    return %c0_i32, %c0_i32_0, %arg0 : i32, i32, i32
  }
  func.func @transform_5(%arg0: i32) -> (i32, i32, i32) {
    %c0_i32 = arith.constant 0 : i32
    %c0_i32_0 = arith.constant 0 : i32
    %c0_i32_1 = arith.constant 0 : i32
    return %c0_i32, %c0_i32_0, %arg0 : i32, i32, i32
  }
  func.func @transform_6(%arg0: i32) -> (i32, i32) {
    %c0_i32 = arith.constant 0 : i32
    %c0_i32_0 = arith.constant 0 : i32
    return %c0_i32, %arg0 : i32, i32
  }
  func.func @transform_7(%arg0: i32) -> (i32, i32, i32) {
    %c0_i32 = arith.constant 0 : i32
    %c0_i32_0 = arith.constant 0 : i32
    %c0_i32_1 = arith.constant 0 : i32
    return %c0_i32, %c0_i32_0, %arg0 : i32, i32, i32
  }
  func.func @transform_8(%arg0: i32) -> (i32, i32, i32) {
    %c0_i32 = arith.constant 0 : i32
    %c0_i32_0 = arith.constant 0 : i32
    %c0_i32_1 = arith.constant 0 : i32
    return %c0_i32, %c0_i32_0, %arg0 : i32, i32, i32
  }
}

</mosaic_0001>

<llo_original>
// kernel: tpu_custom_call.1
$region0: #{tpu_custom_call.1}
  #allocation0 [shape = 'u32[]', space=smem, size = 0x4, offset = 0x4, fixed_abs, tag = 'smem constant byte address 0x4 - core index']
  #allocation1 [shape = 'u32[144,128]{1,0:T(1,128)}', space=vmem, size = 0x12000, scoped, tag = 'internal scratch']
  %s0 = inlined_call_operand.vmem [shape: f32[5,2], index: 0, kind: input, shape index: {}]
  %s1 = inlined_call_operand.vmem [shape: f32[96,40], index: 1, kind: input, shape index: {}]
  %s2 = inlined_call_operand.vmem [shape: f32[96,1], index: 2, kind: input, shape index: {}]
  %s3 = inlined_call_operand.vmem [shape: f32[40,36], index: 3, kind: input, shape index: {}]
  %s4 = inlined_call_operand.vmem [shape: f32[2,11,36], index: 4, kind: input, shape index: {}]
  %s5 = inlined_call_operand.vmem [shape: f32[2,11,36], index: 5, kind: input, shape index: {}]
  %s6 = inlined_call_operand.hbm [shape: f32[11,36], index: 6, kind: output, shape index: {0}]
  %s7 = inlined_call_operand.vmem [shape: f32[2,11,36], index: 7, kind: output, shape index: {1}]
  %s8 = inlined_call_operand.vmem [shape: f32[2,11,36], index: 8, kind: output, shape index: {2}]
  %9 = xla_tuple %s6, %s7, %s8
  %s10 = sld [smem:[#allocation0]]
  $region54: #{tpu_custom_call.1} parent=0
    _
  %s12 = ssub.s32 1, %s10
  %s13 = scalar_select 0, %s12, %s10
  $region1: #{tpu_custom_call.1} parent=0
    #allocation2 [shape = 'u8[4096]{0}', space=smem, size = 0x1000, scoped, tag = 'input window, operand 0, single buffered']
    #allocation3 [shape = 's32[1]{0}', space=sflag, size = 0x4, scoped, tag = 'scoped memory for tpu_custom_call.1']
    #allocation4 [shape = 's32[1]{0}', space=sflag, size = 0x4, scoped, tag = 'scoped memory for tpu_custom_call.1']
    #allocation5 [shape = 'u8[8192]{0}', space=vmem, size = 0x2000, scoped, tag = 'output window, operand 0, single buffered']
    %14 = vsyncpa [#allocation4], 0
    %15 = vsyncpa [#allocation3], 0
    // Predicated region
    $region2: #{tpu_custom_call.1} parent=1 // pred_check
      _
    $region3: #{tpu_custom_call.1} parent=1 // pred_check_branch
      %17 = sbr.rel (0) target = $region5
    $region4: #{tpu_custom_call.1} parent=1 // pred_region
      %s19 = ssub.s32 128, 128
      %20 = vsyncadd [#allocation4], %s19
      %s22 = sshll.u32 %s0, 4
      %s23 = int_to_ptr.vmem [resolvable:$true] %s22
      %25 = dma.vmem_to_smem %s23, 128, [#allocation2], [#allocation4]
    $region5: #{tpu_custom_call.1} parent=1 // pred_fallthru
      _
    // Predicated region
    $region6: #{tpu_custom_call.1} parent=1 // pred_check
      _
    $region7: #{tpu_custom_call.1} parent=1 // pred_check_branch
      %27 = sbr.rel (0) target = $region9
    $region8: #{tpu_custom_call.1} parent=1 // pred_region
      _
    $region9: #{tpu_custom_call.1} parent=1 // pred_fallthru
      _
    // Predicated region
    $region10: #{tpu_custom_call.1} parent=1 // pred_check
      _
    $region11: #{tpu_custom_call.1} parent=1 // pred_check_branch
      %29 = sbr.rel (0) target = $region13
    $region12: #{tpu_custom_call.1} parent=1 // pred_region
      _
    $region13: #{tpu_custom_call.1} parent=1 // pred_fallthru
      _
    // Predicated region
    $region14: #{tpu_custom_call.1} parent=1 // pred_check
      _
    $region15: #{tpu_custom_call.1} parent=1 // pred_check_branch
      %31 = sbr.rel (0) target = $region17
    $region16: #{tpu_custom_call.1} parent=1 // pred_region
      _
    $region17: #{tpu_custom_call.1} parent=1 // pred_fallthru
      _
    // Predicated region
    $region18: #{tpu_custom_call.1} parent=1 // pred_check
      _
    $region19: #{tpu_custom_call.1} parent=1 // pred_check_branch
      %33 = sbr.rel (0) target = $region21
    $region20: #{tpu_custom_call.1} parent=1 // pred_region
      _
    $region21: #{tpu_custom_call.1} parent=1 // pred_fallthru
      _
    // Predicated region
    $region22: #{tpu_custom_call.1} parent=1 // pred_check
      _
    $region23: #{tpu_custom_call.1} parent=1 // pred_check_branch
      %35 = sbr.rel (0) target = $region25
    $region24: #{tpu_custom_call.1} parent=1 // pred_region
      _
    $region25: #{tpu_custom_call.1} parent=1 // pred_fallthru
      _
    // Predicated region
    $region26: #{tpu_custom_call.1} parent=1 // pred_check
      _
    $region27: #{tpu_custom_call.1} parent=1 // pred_check_branch
      %37 = sbr.rel (0) target = $region29
    $region28: #{tpu_custom_call.1} parent=1 // pred_region
      %38 = dma.done [#allocation4], 128
    $region29: #{tpu_custom_call.1} parent=1 // pred_fallthru
      _
    %39 = sfence
    %v40 = vld [vmem:[%s1] sm:$0xff]
    %v41 = vld [vmem:[%s1 + $0x8] sm:$0xff]
    %v42 = vld [vmem:[%s1 + $0x10] sm:$0xff]
    %v43 = vld [vmem:[%s1 + $0x18] sm:$0xff]
    %v44 = vld [vmem:[%s1 + $0x20] sm:$0xff]
    %v45 = vld [vmem:[%s1 + $0x28] sm:$0xff]
    %v46 = vld [vmem:[%s1 + $0x30] sm:$0xff]
    %v47 = vld [vmem:[%s1 + $0x38] sm:$0xff]
    %v48 = vld [vmem:[%s1 + $0x40] sm:$0xff]
    %v49 = vld [vmem:[%s1 + $0x48] sm:$0xff]
    %v50 = vld [vmem:[%s1 + $0x50] sm:$0xff]
    %v51 = vld [vmem:[%s1 + $0x58] sm:$0xff]
    %v52 = vld [vmem:[%s3] sm:$0xff]
    %v53 = vld [vmem:[%s3 + $0x8] sm:$0xff]
    %v54 = vld [vmem:[%s3 + $0x10] sm:$0xff]
    %v55 = vld [vmem:[%s3 + $0x18] sm:$0xff]
    %v56 = vld [vmem:[%s3 + $0x20] sm:$0xff]
    %v57 = vld [vmem:[%s2] sm:$0xff]
    %v58 = vld [vmem:[%s2 + $0x8] sm:$0xff]
    %v59 = vld [vmem:[%s2 + $0x10] sm:$0xff]
    %v60 = vld [vmem:[%s2 + $0x18] sm:$0xff]
    %v61 = vld [vmem:[%s2 + $0x20] sm:$0xff]
    %v62 = vld [vmem:[%s2 + $0x28] sm:$0xff]
    %v63 = vld [vmem:[%s2 + $0x30] sm:$0xff]
    %v64 = vld [vmem:[%s2 + $0x38] sm:$0xff]
    %v65 = vld [vmem:[%s2 + $0x40] sm:$0xff]
    %v66 = vld [vmem:[%s2 + $0x48] sm:$0xff]
    %v67 = vld [vmem:[%s2 + $0x50] sm:$0xff]
    %v68 = vld [vmem:[%s2 + $0x58] sm:$0xff]
    %70 = vset.pattern.permute.xlu0 0
    %71 = vperm.xlu0 %70, %v57
    %v72 = vpop.permute.xlu0 %71
    %75 = vset.pattern.permute.xlu0 0
    %76 = vperm.xlu0 %75, %v58
    %v77 = vpop.permute.xlu0 %76
    %80 = vset.pattern.permute.xlu0 0
    %81 = vperm.xlu0 %80, %v59
    %v82 = vpop.permute.xlu0 %81
    %85 = vset.pattern.permute.xlu0 0
    %86 = vperm.xlu0 %85, %v60
    %v87 = vpop.permute.xlu0 %86
    %90 = vset.pattern.permute.xlu0 0
    %91 = vperm.xlu0 %90, %v61
    %v92 = vpop.permute.xlu0 %91
    %95 = vset.pattern.permute.xlu0 0
    %96 = vperm.xlu0 %95, %v62
    %v97 = vpop.permute.xlu0 %96
    %100 = vset.pattern.permute.xlu0 0
    %101 = vperm.xlu0 %100, %v63
    %v102 = vpop.permute.xlu0 %101
    %105 = vset.pattern.permute.xlu0 0
    %106 = vperm.xlu0 %105, %v64
    %v107 = vpop.permute.xlu0 %106
    %110 = vset.pattern.permute.xlu0 0
    %111 = vperm.xlu0 %110, %v65
    %v112 = vpop.permute.xlu0 %111
    %115 = vset.pattern.permute.xlu0 0
    %116 = vperm.xlu0 %115, %v66
    %v117 = vpop.permute.xlu0 %116
    %120 = vset.pattern.permute.xlu0 0
    %121 = vperm.xlu0 %120, %v67
    %v122 = vpop.permute.xlu0 %121
    %125 = vset.pattern.permute.xlu0 0
    %126 = vperm.xlu0 %125, %v68
    %v127 = vpop.permute.xlu0 %126
    %vm129 = vcmask 326656
    %v131 = vsel %vm129, %v40, 0
    %v134 = vsel %vm129, %v41, 0
    %v137 = vsel %vm129, %v42, 0
    %v140 = vsel %vm129, %v43, 0
    %v143 = vsel %vm129, %v44, 0
    %v146 = vsel %vm129, %v45, 0
    %v149 = vsel %vm129, %v46, 0
    %v152 = vsel %vm129, %v47, 0
    %v155 = vsel %vm129, %v48, 0
    %v158 = vsel %vm129, %v49, 0
    %v161 = vsel %vm129, %v50, 0
    %v164 = vsel %vm129, %v51, 0
    %166 = vmatprep.subr.mxu0 0.0
    %167 = vmatpush1.msra.mxu0 %v52
    %168 = vmatprep.subr.mxu0 0.0
    %169 = vmatpush1.msra.mxu0 %v53
    %170 = vmatprep.subr.mxu0 0.0
    %171 = vmatpush1.msra.mxu0 %v54
    %172 = vmatprep.subr.mxu0 0.0
    %173 = vmatpush1.msra.mxu0 %v55
    %174 = vmatprep.subr.mxu0 0.0
    %175 = vmatpush1.msra.mxu0 %v56
    %176 = vmatprep.subr.mxu0 0.0
    %177 = vmatpush1.msra.mxu0 0.0
    %178 = vmatprep.subr.mxu0 0.0
    %179 = vmatpush1.msra.mxu0 0.0
    %180 = vmatprep.subr.mxu0 0.0
    %181 = vmatpush1.msra.mxu0 0.0
    %182 = vmatprep.subr.mxu0 0.0
    %183 = vmatpush1.msra.mxu0 0.0
    %184 = vmatprep.subr.mxu0 0.0
    %185 = vmatpush1.msra.mxu0 0.0
    %186 = vmatprep.subr.mxu0 0.0
    %187 = vmatpush1.msra.mxu0 0.0
    %188 = vmatprep.subr.mxu0 0.0
    %189 = vmatpush1.msra.mxu0 0.0
    %190 = vmatprep.subr.mxu0 0.0
    %191 = vmatpush1.msra.mxu0 0.0
    %192 = vmatprep.subr.mxu0 0.0
    %193 = vmatpush1.msra.mxu0 0.0
    %194 = vmatprep.subr.mxu0 0.0
    %195 = vmatpush1.msra.mxu0 0.0
    %196 = vmatprep.subr.mxu0 0.0
    %197 = vmatpush1.msra.mxu0 0.0
    %198 = vmatprep.subr.mxu0 0.0
    %199 = vmatpush1.msra.mxu0 0.0
    %200 = vmatprep.subr.mxu0 0.0
    %201 = vmatpush1.msra.mxu0 0.0
    %202 = vmatprep.subr.mxu0 0.0
    %203 = vmatpush1.msra.mxu0 0.0
    %204 = vmatprep.subr.mxu0 0.0
    %205 = vmatpush1.msra.mxu0 0.0
    %206 = vmatprep.subr.mxu0 0.0
    %207 = vmatpush1.msra.mxu0 0.0
    %208 = vmatprep.subr.mxu0 0.0
    %209 = vmatpush1.msra.mxu0 0.0
    %210 = vmatprep.subr.mxu0 0.0
    %211 = vmatpush1.msra.mxu0 0.0
    %212 = vmatprep.subr.mxu0 0.0
    %213 = vmatpush1.msra.mxu0 0.0
    %214 = vmatprep.subr.mxu0 0.0
    %215 = vmatpush1.msra.mxu0 0.0
    %216 = vmatprep.subr.mxu0 0.0
    %217 = vmatpush1.msra.mxu0 0.0
    %218 = vmatprep.subr.mxu0 0.0
    %219 = vmatpush1.msra.mxu0 0.0
    %220 = vmatprep.subr.mxu0 0.0
    %221 = vmatpush1.msra.mxu0 0.0
    %222 = vmatprep.subr.mxu0 0.0
    %223 = vmatpush1.msra.mxu0 0.0
    %224 = vmatprep.subr.mxu0 0.0
    %225 = vmatpush1.msra.mxu0 0.0
    %226 = vmatprep.subr.mxu0 0.0
    %227 = vmatpush1.msra.mxu0 0.0
    %228 = vmatprep.subr.mxu0 0.0
    %229 = vmatpush1.msra.mxu0 0.0
    %230 = vmatprep.mubr.f32.mxu0 0.0
    %231 = vmatmul.mubr.f32.gmra.mrb[0].mxu0 %v131
    %v232 = vpop.f32.mrb[0].mxu0
    %v233 = vadd.f32 %v72, %v232
    %v234 = vpop.f32.mrb[0].mxu0
    %235 = vmatprep.mubr.f32.mxu0 0.0
    %236 = vmatmul.mubr.f32.gmra.mrb[0].mxu0 %v134
    %v237 = vpop.f32.mrb[0].mxu0
    %v238 = vadd.f32 %v77, %v237
    %v239 = vpop.f32.mrb[0].mxu0
    %240 = vmatprep.mubr.f32.mxu0 0.0
    %241 = vmatmul.mubr.f32.gmra.mrb[0].mxu0 %v137
    %v242 = vpop.f32.mrb[0].mxu0
    %v243 = vadd.f32 %v82, %v242
    %v244 = vpop.f32.mrb[0].mxu0
    %245 = vmatprep.mubr.f32.mxu0 0.0
    %246 = vmatmul.mubr.f32.gmra.mrb[0].mxu0 %v140
    %v247 = vpop.f32.mrb[0].mxu0
    %v248 = vadd.f32 %v87, %v247
    %v249 = vpop.f32.mrb[0].mxu0
    %250 = vmatprep.mubr.f32.mxu0 0.0
    %251 = vmatmul.mubr.f32.gmra.mrb[0].mxu0 %v143
    %v252 = vpop.f32.mrb[0].mxu0
    %v253 = vadd.f32 %v92, %v252
    %v254 = vpop.f32.mrb[0].mxu0
    %255 = vmatprep.mubr.f32.mxu0 0.0
    %256 = vmatmul.mubr.f32.gmra.mrb[0].mxu0 %v146
    %v257 = vpop.f32.mrb[0].mxu0
    %v258 = vadd.f32 %v97, %v257
    %v259 = vpop.f32.mrb[0].mxu0
    %260 = vmatprep.mubr.f32.mxu0 0.0
    %261 = vmatmul.mubr.f32.gmra.mrb[0].mxu0 %v149
    %v262 = vpop.f32.mrb[0].mxu0
    %v263 = vadd.f32 %v102, %v262
    %v264 = vpop.f32.mrb[0].mxu0
    %265 = vmatprep.mubr.f32.mxu0 0.0
    %266 = vmatmul.mubr.f32.gmra.mrb[0].mxu0 %v152
    %v267 = vpop.f32.mrb[0].mxu0
    %v268 = vadd.f32 %v107, %v267
    %v269 = vpop.f32.mrb[0].mxu0
    %270 = vmatprep.mubr.f32.mxu0 0.0
    %271 = vmatmul.mubr.f32.gmra.mrb[0].mxu0 %v155
    %v272 = vpop.f32.mrb[0].mxu0
    %v273 = vadd.f32 %v112, %v272
    %v274 = vpop.f32.mrb[0].mxu0
    %275 = vmatprep.mubr.f32.mxu0 0.0
    %276 = vmatmul.mubr.f32.gmra.mrb[0].mxu0 %v158
    %v277 = vpop.f32.mrb[0].mxu0
    %v278 = vadd.f32 %v117, %v277
    %v279 = vpop.f32.mrb[0].mxu0
    %280 = vmatprep.mubr.f32.mxu0 0.0
    %281 = vmatmul.mubr.f32.gmra.mrb[0].mxu0 %v161
    %v282 = vpop.f32.mrb[0].mxu0
    %v283 = vadd.f32 %v122, %v282
    %v284 = vpop.f32.mrb[0].mxu0
    %285 = vmatprep.mubr.f32.mxu0 0.0
    %286 = vmatmul.mubr.f32.gmra.mrb[0].mxu0 %v164
    %v287 = vpop.f32.mrb[0].mxu0
    %v288 = vadd.f32 %v127, %v287
    %v289 = vpop.f32.mrb[0].mxu0
    %290 = vdwg.mxu0
    %v291 = vmax.f32 %v233, 0.0
    %v292 = vmax.f32 %v238, 0.0
    %v293 = vmax.f32 %v243, 0.0
    %v294 = vmax.f32 %v248, 0.0
    %v295 = vmax.f32 %v253, 0.0
    %v296 = vmax.f32 %v258, 0.0
    %v297 = vmax.f32 %v263, 0.0
    %v298 = vmax.f32 %v268, 0.0
    %v299 = vmax.f32 %v273, 0.0
    %v300 = vmax.f32 %v278, 0.0
    %v301 = vmax.f32 %v283, 0.0
    %v302 = vmax.f32 %v288, 0.0
    %s303 = sld [smem:[#allocation2]]
    %s304 = sld [smem:[#allocation2 + $0x80]]
    %s305 = sld [smem:[#allocation2 + $0x100]]
    %s306 = sld [smem:[#allocation2 + $0x180]]
    %s307 = sld [smem:[#allocation2 + $0x200]]
    %v308 = vstv %s304
    %v309 = vmul.f32 %v295, %v308
    %v310 = vmul.f32 %v296, %v308
    %v311 = vstv %s303
    %v312 = vmul.f32 %v291, %v311
    %v313 = vmul.f32 %v292, %v311
    %316 = vrot.lane.b32.xlu0 %v309, 127
    %v317 = vpop.permute.xlu0 %316
    %318 = vrot.lane.b32.xlu0 %v310, 127
    %v319 = vpop.permute.xlu0 %318
    %v322 = vadd.f32 %v312, %v317
    %v323 = vadd.f32 %v313, %v319
    %v324 = vstv %s305
    %v325 = vmul.f32 %v299, %v324
    %v326 = vmul.f32 %v300, %v324
    %329 = vrot.lane.b32.xlu0 %v325, 126
    %v330 = vpop.permute.xlu0 %329
    %331 = vrot.lane.b32.xlu0 %v326, 126
    %v332 = vpop.permute.xlu0 %331
    %v335 = vadd.f32 %v322, %v330
    %v336 = vadd.f32 %v323, %v332
    %337 = vrot.lane.b32.xlu0 %v309, 1
    %v338 = vpop.permute.xlu0 %337
    %339 = vrot.lane.b32.xlu0 %v310, 1
    %v340 = vpop.permute.xlu0 %339
    %v343 = vadd.f32 %v312, %v338
    %v344 = vadd.f32 %v313, %v340
    %345 = vrot.lane.b32.xlu0 %v325, 2
    %v346 = vpop.permute.xlu0 %345
    %347 = vrot.lane.b32.xlu0 %v326, 2
    %v348 = vpop.permute.xlu0 %347
    %v351 = vadd.f32 %v343, %v346
    %v352 = vadd.f32 %v344, %v348
    %v353 = vadd.f32 %v291, 1.0
    %v354 = vadd.f32 %v292, 1.0
    %357 = vrot.lane.b32.xlu0 %v295, 127
    %v358 = vpop.permute.xlu0 %357
    %359 = vrot.lane.b32.xlu0 %v296, 127
    %v360 = vpop.permute.xlu0 %359
    %v363 = vadd.f32 %v353, %v358
    %v364 = vadd.f32 %v354, %v360
    %367 = vrot.lane.b32.xlu0 %v299, 126
    %v368 = vpop.permute.xlu0 %367
    %369 = vrot.lane.b32.xlu0 %v300, 126
    %v370 = vpop.permute.xlu0 %369
    %v373 = vadd.f32 %v363, %v368
    %v374 = vadd.f32 %v364, %v370
    %v375 = vrcp.pop %v373
    %v376 = vrcp.pop %v374
    %377 = vrot.lane.b32.xlu0 %v295, 1
    %v378 = vpop.permute.xlu0 %377
    %379 = vrot.lane.b32.xlu0 %v296, 1
    %v380 = vpop.permute.xlu0 %379
    %v383 = vadd.f32 %v353, %v378
    %v384 = vadd.f32 %v354, %v380
    %385 = vrot.lane.b32.xlu0 %v299, 2
    %v386 = vpop.permute.xlu0 %385
    %387 = vrot.lane.b32.xlu0 %v300, 2
    %v388 = vpop.permute.xlu0 %387
    %v391 = vadd.f32 %v383, %v386
    %v392 = vadd.f32 %v384, %v388
    %v393 = vrcp.pop %v391
    %v394 = vrcp.pop %v392
    %v395 = vmul.f32 %v335, %v375
    %v396 = vmul.f32 %v336, %v376
    %v397 = vstv %s306
    %v398 = vadd.f32 %v395, %v397
    %v399 = vadd.f32 %v396, %v397
    %v400 = vmax.f32 %v398, 0.0
    %v401 = vmax.f32 %v399, 0.0
    %v402 = vmul.f32 %v351, %v393
    %v403 = vmul.f32 %v352, %v394
    %v404 = vadd.f32 %v402, %v397
    %v405 = vadd.f32 %v403, %v397
    %v406 = vmax.f32 %v404, 0.0
    %v407 = vmax.f32 %v405, 0.0
    %vm408 = vcmask 277504
    %409 = vst.msk [vmem:[%s7] sm:$0xff] %vm408, %v400
    %vm410 = vcmask 272384
    %411 = vst.msk [vmem:[%s7 + $0x8] sm:$0x7] %vm410, %v401
    %414 = vrot.lane.b32.xlu0 %v406, 126
    %v415 = vpop.permute.xlu0 %414
    %416 = vrot.lane.b32.xlu0 %v407, 126
    %v417 = vpop.permute.xlu0 %416
    %420 = vst.msk [vmem:[%s8] sm:$0xff] %vm408, %v415
    %421 = vst.msk [vmem:[%s8 + $0x8] sm:$0x7] %vm410, %v417
    %v422 = vld [vmem:[%s4] sm:$0xff]
    %v423 = vld [vmem:[%s4 + $0x8] sm:$0x7]
    %v424 = vld [vmem:[%s5] sm:$0xff]
    %v425 = vld [vmem:[%s5 + $0x8] sm:$0x7]
    %v426 = vadd.f32 %v422, 1.0
    %v427 = vadd.f32 %v423, 1.0
    %v428 = vmul.f32 %v400, %v426
    %v429 = vmul.f32 %v401, %v427
    %v430 = vadd.f32 %v424, 1.0
    %v431 = vadd.f32 %v425, 1.0
    %434 = vrot.lane.b32.xlu0 %v430, 2
    %v435 = vpop.permute.xlu0 %434
    %436 = vrot.lane.b32.xlu0 %v431, 2
    %v437 = vpop.permute.xlu0 %436
    %v440 = vmul.f32 %v406, %v435
    %v441 = vmul.f32 %v407, %v437
    %444 = vrot.lane.b32.xlu0 %v440, 126
    %v445 = vpop.permute.xlu0 %444
    %446 = vrot.lane.b32.xlu0 %v441, 126
    %v447 = vpop.permute.xlu0 %446
    %v450 = vsub.f32 %v428, %v445
    %v451 = vsub.f32 %v429, %v447
    %v452 = vstv %s307
    %v453 = vmul.f32 %v450, %v452
    %v454 = vmul.f32 %v451, %v452
    %s455 = sld [smem:[#allocation2 + $0x1]]
    %s456 = sld [smem:[#allocation2 + $0x81]]
    %s457 = sld [smem:[#allocation2 + $0x101]]
    %s458 = sld [smem:[#allocation2 + $0x181]]
    %s459 = sld [smem:[#allocation2 + $0x201]]
    %v460 = vstv %s456
    %v461 = vmul.f32 %v297, %v460
    %v462 = vmul.f32 %v298, %v460
    %v463 = vstv %s455
    %v464 = vmul.f32 %v293, %v463
    %v465 = vmul.f32 %v294, %v463
    %468 = vrot.lane.b32.xlu0 %v461, 127
    %v469 = vpop.permute.xlu0 %468
    %470 = vrot.lane.b32.xlu0 %v462, 127
    %v471 = vpop.permute.xlu0 %470
    %v474 = vadd.f32 %v464, %v469
    %v475 = vadd.f32 %v465, %v471
    %v476 = vstv %s457
    %v477 = vmul.f32 %v301, %v476
    %v478 = vmul.f32 %v302, %v476
    %481 = vrot.lane.b32.xlu0 %v477, 126
    %v482 = vpop.permute.xlu0 %481
    %483 = vrot.lane.b32.xlu0 %v478, 126
    %v484 = vpop.permute.xlu0 %483
    %v487 = vadd.f32 %v474, %v482
    %v488 = vadd.f32 %v475, %v484
    %489 = vrot.lane.b32.xlu0 %v461, 1
    %v490 = vpop.permute.xlu0 %489
    %491 = vrot.lane.b32.xlu0 %v462, 1
    %v492 = vpop.permute.xlu0 %491
    %v495 = vadd.f32 %v464, %v490
    %v496 = vadd.f32 %v465, %v492
    %497 = vrot.lane.b32.xlu0 %v477, 2
    %v498 = vpop.permute.xlu0 %497
    %499 = vrot.lane.b32.xlu0 %v478, 2
    %v500 = vpop.permute.xlu0 %499
    %v503 = vadd.f32 %v495, %v498
    %v504 = vadd.f32 %v496, %v500
    %v505 = vadd.f32 %v293, 1.0
    %v506 = vadd.f32 %v294, 1.0
    %509 = vrot.lane.b32.xlu0 %v297, 127
    %v510 = vpop.permute.xlu0 %509
    %511 = vrot.lane.b32.xlu0 %v298, 127
    %v512 = vpop.permute.xlu0 %511
    %v515 = vadd.f32 %v505, %v510
    %v516 = vadd.f32 %v506, %v512
    %519 = vrot.lane.b32.xlu0 %v301, 126
    %v520 = vpop.permute.xlu0 %519
    %521 = vrot.lane.b32.xlu0 %v302, 126
    %v522 = vpop.permute.xlu0 %521
    %v525 = vadd.f32 %v515, %v520
    %v526 = vadd.f32 %v516, %v522
    %v527 = vrcp.pop %v525
    %v528 = vrcp.pop %v526
    %529 = vrot.lane.b32.xlu0 %v297, 1
    %v530 = vpop.permute.xlu0 %529
    %531 = vrot.lane.b32.xlu0 %v298, 1
    %v532 = vpop.permute.xlu0 %531
    %v535 = vadd.f32 %v505, %v530
    %v536 = vadd.f32 %v506, %v532
    %537 = vrot.lane.b32.xlu0 %v301, 2
    %v538 = vpop.permute.xlu0 %537
    %539 = vrot.lane.b32.xlu0 %v302, 2
    %v540 = vpop.permute.xlu0 %539
    %v543 = vadd.f32 %v535, %v538
    %v544 = vadd.f32 %v536, %v540
    %v545 = vrcp.pop %v543
    %v546 = vrcp.pop %v544
    %v547 = vmul.f32 %v487, %v527
    %v548 = vmul.f32 %v488, %v528
    %v549 = vstv %s458
    %v550 = vadd.f32 %v547, %v549
    %v551 = vadd.f32 %v548, %v549
    %v552 = vmax.f32 %v550, 0.0
    %v553 = vmax.f32 %v551, 0.0
    %v554 = vmul.f32 %v503, %v545
    %v555 = vmul.f32 %v504, %v546
    %v556 = vadd.f32 %v554, %v549
    %v557 = vadd.f32 %v555, %v549
    %v558 = vmax.f32 %v556, 0.0
    %v559 = vmax.f32 %v557, 0.0
    %s560 = scalar_lea.vmem %s7, 16
    %561 = vst.msk [vmem:[%s560] sm:$0xff] %vm408, %v552
    %562 = vst.msk [vmem:[%s560 + $0x8] sm:$0x7] %vm410, %v553
    %565 = vrot.lane.b32.xlu0 %v558, 126
    %v566 = vpop.permute.xlu0 %565
    %567 = vrot.lane.b32.xlu0 %v559, 126
    %v568 = vpop.permute.xlu0 %567
    %s571 = scalar_lea.vmem %s8, 16
    %572 = vst.msk [vmem:[%s571] sm:$0xff] %vm408, %v566
    %573 = vst.msk [vmem:[%s571 + $0x8] sm:$0x7] %vm410, %v568
    %s574 = scalar_lea.vmem %s4, 16
    %v575 = vld [vmem:[%s574] sm:$0xff]
    %v576 = vld [vmem:[%s574 + $0x8] sm:$0x7]
    %s577 = scalar_lea.vmem %s5, 16
    %v578 = vld [vmem:[%s577] sm:$0xff]
    %v579 = vld [vmem:[%s577 + $0x8] sm:$0x7]
    %v580 = vadd.f32 %v575, 1.0
    %v581 = vadd.f32 %v576, 1.0
    %v582 = vmul.f32 %v552, %v580
    %v583 = vmul.f32 %v553, %v581
    %v584 = vadd.f32 %v578, 1.0
    %v585 = vadd.f32 %v579, 1.0
    %588 = vrot.lane.b32.xlu0 %v584, 2
    %v589 = vpop.permute.xlu0 %588
    %590 = vrot.lane.b32.xlu0 %v585, 2
    %v591 = vpop.permute.xlu0 %590
    %v594 = vmul.f32 %v558, %v589
    %v595 = vmul.f32 %v559, %v591
    %598 = vrot.lane.b32.xlu0 %v594, 126
    %v599 = vpop.permute.xlu0 %598
    %600 = vrot.lane.b32.xlu0 %v595, 126
    %v601 = vpop.permute.xlu0 %600
    %v604 = vsub.f32 %v582, %v599
    %v605 = vsub.f32 %v583, %v601
    %v606 = vstv %s459
    %v607 = vmul.f32 %v604, %v606
    %v608 = vmul.f32 %v605, %v606
    %v609 = vadd.f32 %v453, %v607
    %v610 = vadd.f32 %v454, %v608
    %611 = vst.msk [vmem:[#allocation5] sm:$0xff] %vm408, %v609
    %612 = vst.msk [vmem:[#allocation5 + $0x8] sm:$0x7] %vm410, %v610
    // Predicated region
    $region30: #{tpu_custom_call.1} parent=1 // pred_check
      _
    $region31: #{tpu_custom_call.1} parent=1 // pred_check_branch
      %614 = sbr.rel (0) target = $region33
    $region32: #{tpu_custom_call.1} parent=1 // pred_region
      %s616 = ssub.s32 256, 256
      %617 = vsyncadd [#allocation3], %s616
      %s618 = sshll.u32 [#allocation5], 4
      %s619 = int_to_ptr.vmem [resolvable:$true] %s618
      %624 = dma.vmem_to_hbm [thread:$0]  %s619, 256, %s6, [#allocation3], 128, 128, 8
    $region33: #{tpu_custom_call.1} parent=1 // pred_fallthru
      _
    // Predicated region
    $region34: #{tpu_custom_call.1} parent=1 // pred_check
      _
    $region35: #{tpu_custom_call.1} parent=1 // pred_check_branch
      %626 = sbr.rel (0) target = $region37
    $region36: #{tpu_custom_call.1} parent=1 // pred_region
      _
    $region37: #{tpu_custom_call.1} parent=1 // pred_fallthru
      _
    // Predicated region
    $region38: #{tpu_custom_call.1} parent=1 // pred_check
      _
    $region39: #{tpu_custom_call.1} parent=1 // pred_check_branch
      %628 = sbr.rel (0) target = $region41
    $region40: #{tpu_custom_call.1} parent=1 // pred_region
      _
    $region41: #{tpu_custom_call.1} parent=1 // pred_fallthru
      _
    // Predicated region
    $region42: #{tpu_custom_call.1} parent=1 // pred_check
      _
    $region43: #{tpu_custom_call.1} parent=1 // pred_check_branch
      %630 = sbr.rel (0) target = $region45
    $region44: #{tpu_custom_call.1} parent=1 // pred_region
      %631 = dma.done [#allocation3], 256
    $region45: #{tpu_custom_call.1} parent=1 // pred_fallthru
      _
    // Predicated region
    $region46: #{tpu_custom_call.1} parent=1 // pred_check
      _
    $region47: #{tpu_custom_call.1} parent=1 // pred_check_branch
      %633 = sbr.rel (0) target = $region49
    $region48: #{tpu_custom_call.1} parent=1 // pred_region
      _
    $region49: #{tpu_custom_call.1} parent=1 // pred_fallthru
      _
    // Predicated region
    $region50: #{tpu_custom_call.1} parent=1 // pred_check
      _
    $region51: #{tpu_custom_call.1} parent=1 // pred_check_branch
      %635 = sbr.rel (0) target = $region53
    $region52: #{tpu_custom_call.1} parent=1 // pred_region
      _
    $region53: #{tpu_custom_call.1} parent=1 // pred_fallthru
      _
    %636 = vsyncpa [#allocation3], 1
    %637 = vsyncpa [#allocation4], 1

</llo_original>
